<compile_context>
chip_gen: v7x
topology: tpu7x:2x2x1
jax: 0.10.0
libtpu: 0.0.40
codegen_flags: <defaults>
</compile_context>

<pallas_src>
import functools

import jax
import jax.numpy as jnp
from jax.experimental import pallas as pl
from jax.experimental.pallas import tpu as pltpu


DIMS = [(9, 20), (20, 30), (30, 10), (10, 2)]
IN_DIM = DIMS[0][0]
OUT_DIM = DIMS[-1][1]
DEFAULT_TILE_B = 4096  # rows per grid step; large tiles amortize per-step overhead


def _round_up(n, m):
    return ((n + m - 1) // m) * m


def mlp2_kernel(x_ref,
                w1_ref, b1_ref,
                w2_ref, b2_ref,
                w3_ref, b3_ref,
                w4_ref, b4_ref,
                out_ref):
    """Fused feature-major MLP: activations are (features, batch_tile)."""
    x = x_ref[...]  # (tile, 9) f32, batch-major as stored in HBM

    # Layer 1: W1 @ x^T, expressed as a contraction over both operands' last dim
    # (the same A @ B^T pattern the MXU runs for attention scores) -> (20, tile).
    h = jax.lax.dot_general(
        w1_ref[...], x, (((1,), (1,)), ((), ())),
        preferred_element_type=jnp.float32)
    h = jnp.maximum(h + b1_ref[...], 0.0)            # lane-dense bias + ReLU

    # Layers 2-3: plain (out, in) @ (in, tile) feature-major matmuls.
    h = jnp.maximum(
        jnp.dot(w2_ref[...], h, preferred_element_type=jnp.float32) + b2_ref[...],
        0.0)
    h = jnp.maximum(
        jnp.dot(w3_ref[...], h, preferred_element_type=jnp.float32) + b3_ref[...],
        0.0)

    # Layer 4 (no activation) -> (2, tile); lane-dense (unmasked) store.
    z = jnp.dot(w4_ref[...], h, preferred_element_type=jnp.float32) + b4_ref[...]
    out_ref[...] = z.astype(out_ref.dtype)


@functools.partial(jax.jit, static_argnames=("tile_b",))
def mlp2_forward(x, params, *, tile_b=DEFAULT_TILE_B):
    """x: (B, 9) float32 -> (B, 2) float32 (same semantics as MLP2.forward)."""
    B, in_dim = x.shape
    if in_dim != IN_DIM:
        raise ValueError(f"expected {IN_DIM} input features, got {in_dim}")

    # Batch tile: a single block for small batches (block dims == array dims),
    # otherwise a multiple of 128 so the (2, tile) output block stays lane-dense.
    # The grid uses cdiv with a partial last block instead of padding x: rows are
    # independent, so garbage OOB rows only produce OOB outputs, which are dropped.
    if B <= tile_b:
        tile = B
    else:
        tile = _round_up(min(tile_b, B), 128)
    grid = (pl.cdiv(B, tile),)

    ws = [params[f"w{i}"] for i in range(1, 5)]   # PyTorch layout: (out, in)
    bs = [params[f"b{i}"] for i in range(1, 5)]   # (out, 1)

    def const(a):  # full-array block + constant index map -> stays VMEM-resident
        return pl.BlockSpec(a.shape, lambda i: (0,) * a.ndim)

    out_t = pl.pallas_call(
        mlp2_kernel,
        out_shape=jax.ShapeDtypeStruct((OUT_DIM, B), jnp.float32),
        grid=grid,
        in_specs=[
            # x tile (tile, 9): last dim equals the full array dim, first dim is
            # either the full batch or a multiple of 128 (hence of 8).
            pl.BlockSpec((tile, IN_DIM), lambda i: (i, 0)),
            const(ws[0]), const(bs[0]),
            const(ws[1]), const(bs[1]),
            const(ws[2]), const(bs[2]),
            const(ws[3]), const(bs[3]),
        ],
        # (2, tile) output block: batch on the lane axis -> unmasked stores.
        out_specs=pl.BlockSpec((OUT_DIM, tile), lambda i: (0, i)),
        compiler_params=pltpu.CompilerParams(
            # Independent batch tiles; lets v7x's two TensorCores split the grid
            # (no-op on v5e/v6e).
            # TODO(synk): if xprof on v7x shows one idle TensorCore, switch this
            # axis to pltpu.CORE_PARALLEL (requires >= 2 grid steps).
            dimension_semantics=("parallel",),
        ),
    )(x, ws[0], bs[0], ws[1], bs[1], ws[2], bs[2], ws[3], bs[3])

    # Transpose the tiny (2, B) result back to the PyTorch (B, 2) convention.
    return out_t.T


def init_params(key):
    """nn.Linear-style init: U(-1/sqrt(fan_in), 1/sqrt(fan_in)), (out, in) layout."""
    params = {}
    keys = jax.random.split(key, 2 * len(DIMS))
    for i, (fan_in, fan_out) in enumerate(DIMS):
        bound = 1.0 / (float(fan_in) ** 0.5)
        params[f"w{i + 1}"] = jax.random.uniform(
            keys[2 * i], (fan_out, fan_in), minval=-bound, maxval=bound,
            dtype=jnp.float32)
        params[f"b{i + 1}"] = jax.random.uniform(
            keys[2 * i + 1], (fan_out, 1), minval=-bound, maxval=bound,
            dtype=jnp.float32)
    return params


def mlp2_ref(x, params):
    """Pure-JAX f32 reference (HIGHEST matmul precision)."""
    h = x
    z = None
    for i in range(1, 5):
        w = params[f"w{i}"]
        b = params[f"b{i}"][:, 0]
        z = jnp.dot(h, w.T, precision=jax.lax.Precision.HIGHEST) + b
        if i < 4:
            h = jnp.maximum(z, 0.0)
    return z


if __name__ == "__main__":
    key = jax.random.PRNGKey(0)
    pkey, xkey, xkey2 = jax.random.split(key, 3)
    params = init_params(pkey)

    # Small single-tile case.
    B = 16
    x = jax.random.normal(xkey, (B, IN_DIM), dtype=jnp.float32)
    out = jax.block_until_ready(mlp2_forward(x, params))
    ref = mlp2_ref(x, params)
    assert out.shape == (B, OUT_DIM), out.shape
    # Loose-ish tolerance only to stay agnostic to the MXU's f32 pass decomposition;
    # any structural bug (wrong transpose/bias) would be orders of magnitude larger.
    assert jnp.allclose(out, ref, atol=1e-2, rtol=1e-2), \
        f"mismatch vs reference (max abs err {jnp.max(jnp.abs(out - ref))})"

    # Multi-tile case with a ragged last block (exercises the cdiv-grid path).
    B2 = 300
    x2 = jax.random.normal(xkey2, (B2, IN_DIM), dtype=jnp.float32)
    out2 = jax.block_until_ready(mlp2_forward(x2, params, tile_b=128))
    ref2 = mlp2_ref(x2, params)
    assert out2.shape == (B2, OUT_DIM), out2.shape
    assert jnp.allclose(out2, ref2, atol=1e-2, rtol=1e-2), \
        f"mismatch vs reference (max abs err {jnp.max(jnp.abs(out2 - ref2))})"

    print("KERNEL_OK")
</pallas_src>

<mosaic_0001>
module attributes {stable_mosaic.version = 11 : i64} {
  func.func @mlp2_kernel(%arg0: i32, %arg1: memref<16x9xf32, #tpu.memory_space<vmem>>, %arg2: memref<20x9xf32, #tpu.memory_space<vmem>>, %arg3: memref<20x1xf32, #tpu.memory_space<vmem>>, %arg4: memref<30x20xf32, #tpu.memory_space<vmem>>, %arg5: memref<30x1xf32, #tpu.memory_space<vmem>>, %arg6: memref<10x30xf32, #tpu.memory_space<vmem>>, %arg7: memref<10x1xf32, #tpu.memory_space<vmem>>, %arg8: memref<2x10xf32, #tpu.memory_space<vmem>>, %arg9: memref<2x1xf32, #tpu.memory_space<vmem>>, %arg10: memref<2x16xf32, #tpu.memory_space<vmem>>) attributes {dimension_semantics = [#tpu.dimension_semantics<parallel>], iteration_bounds = array<i64: 1>, scalar_prefetch = 0 : i64, scratch_operands = 0 : i64, tpu.core_type = #tpu.core_type<tc>, window_params = [{transform_indices = @transform_0, window_bounds = array<i64: 16, 9>}, {pipeline_mode = #tpu.pipeline_mode<synchronous>, transform_indices = @transform_1, window_bounds = array<i64: 20, 9>}, {pipeline_mode = #tpu.pipeline_mode<synchronous>, transform_indices = @transform_2, window_bounds = array<i64: 20, 1>}, {pipeline_mode = #tpu.pipeline_mode<synchronous>, transform_indices = @transform_3, window_bounds = array<i64: 30, 20>}, {pipeline_mode = #tpu.pipeline_mode<synchronous>, transform_indices = @transform_4, window_bounds = array<i64: 30, 1>}, {pipeline_mode = #tpu.pipeline_mode<synchronous>, transform_indices = @transform_5, window_bounds = array<i64: 10, 30>}, {pipeline_mode = #tpu.pipeline_mode<synchronous>, transform_indices = @transform_6, window_bounds = array<i64: 10, 1>}, {pipeline_mode = #tpu.pipeline_mode<synchronous>, transform_indices = @transform_7, window_bounds = array<i64: 2, 10>}, {pipeline_mode = #tpu.pipeline_mode<synchronous>, transform_indices = @transform_8, window_bounds = array<i64: 2, 1>}, {transform_indices = @transform_9, window_bounds = array<i64: 2, 16>}]} {
    %c0 = arith.constant 0 : index
    %c0_0 = arith.constant 0 : index
    %0 = vector.load %arg1[%c0, %c0_0] : memref<16x9xf32, #tpu.memory_space<vmem>>, vector<16x9xf32>
    %c0_1 = arith.constant 0 : index
    %c0_2 = arith.constant 0 : index
    %1 = vector.load %arg2[%c0_1, %c0_2] : memref<20x9xf32, #tpu.memory_space<vmem>>, vector<20x9xf32>
    %cst = arith.constant dense<0.000000e+00> : vector<20x16xf32>
    %2 = tpu.matmul %1, %0, %cst {dimension_numbers = #tpu.dot_dimension_numbers<[1], [1], [0], [0], [0, 0, 1, 0], [], []>} : vector<20x9xf32>, vector<16x9xf32>, vector<20x16xf32> -> vector<20x16xf32>
    %c0_3 = arith.constant 0 : index
    %c0_4 = arith.constant 0 : index
    %3 = vector.load %arg3[%c0_3, %c0_4] : memref<20x1xf32, #tpu.memory_space<vmem>>, vector<20x1xf32>
    %4 = vector.broadcast %3 : vector<20x1xf32> to vector<20x16xf32>
    %5 = arith.addf %2, %4 : vector<20x16xf32>
    %cst_5 = arith.constant 0.000000e+00 : f32
    %6 = vector.broadcast %cst_5 : f32 to vector<20x16xf32>
    %7 = arith.maximumf %5, %6 : vector<20x16xf32>
    %c0_6 = arith.constant 0 : index
    %c0_7 = arith.constant 0 : index
    %8 = vector.load %arg4[%c0_6, %c0_7] : memref<30x20xf32, #tpu.memory_space<vmem>>, vector<30x20xf32>
    %cst_8 = arith.constant dense<0.000000e+00> : vector<30x16xf32>
    %9 = tpu.matmul %8, %7, %cst_8 {dimension_numbers = #tpu.dot_dimension_numbers<[1], [0], [0], [1], [0, 0, 1, 1], [], []>} : vector<30x20xf32>, vector<20x16xf32>, vector<30x16xf32> -> vector<30x16xf32>
    %c0_9 = arith.constant 0 : index
    %c0_10 = arith.constant 0 : index
    %10 = vector.load %arg5[%c0_9, %c0_10] : memref<30x1xf32, #tpu.memory_space<vmem>>, vector<30x1xf32>
    %11 = vector.broadcast %10 : vector<30x1xf32> to vector<30x16xf32>
    %12 = arith.addf %9, %11 : vector<30x16xf32>
    %cst_11 = arith.constant 0.000000e+00 : f32
    %13 = vector.broadcast %cst_11 : f32 to vector<30x16xf32>
    %14 = arith.maximumf %12, %13 : vector<30x16xf32>
    %c0_12 = arith.constant 0 : index
    %c0_13 = arith.constant 0 : index
    %15 = vector.load %arg6[%c0_12, %c0_13] : memref<10x30xf32, #tpu.memory_space<vmem>>, vector<10x30xf32>
    %cst_14 = arith.constant dense<0.000000e+00> : vector<10x16xf32>
    %16 = tpu.matmul %15, %14, %cst_14 {dimension_numbers = #tpu.dot_dimension_numbers<[1], [0], [0], [1], [0, 0, 1, 1], [], []>} : vector<10x30xf32>, vector<30x16xf32>, vector<10x16xf32> -> vector<10x16xf32>
    %c0_15 = arith.constant 0 : index
    %c0_16 = arith.constant 0 : index
    %17 = vector.load %arg7[%c0_15, %c0_16] : memref<10x1xf32, #tpu.memory_space<vmem>>, vector<10x1xf32>
    %18 = vector.broadcast %17 : vector<10x1xf32> to vector<10x16xf32>
    %19 = arith.addf %16, %18 : vector<10x16xf32>
    %cst_17 = arith.constant 0.000000e+00 : f32
    %20 = vector.broadcast %cst_17 : f32 to vector<10x16xf32>
    %21 = arith.maximumf %19, %20 : vector<10x16xf32>
    %c0_18 = arith.constant 0 : index
    %c0_19 = arith.constant 0 : index
    %22 = vector.load %arg8[%c0_18, %c0_19] : memref<2x10xf32, #tpu.memory_space<vmem>>, vector<2x10xf32>
    %cst_20 = arith.constant dense<0.000000e+00> : vector<2x16xf32>
    %23 = tpu.matmul %22, %21, %cst_20 {dimension_numbers = #tpu.dot_dimension_numbers<[1], [0], [0], [1], [0, 0, 1, 1], [], []>} : vector<2x10xf32>, vector<10x16xf32>, vector<2x16xf32> -> vector<2x16xf32>
    %c0_21 = arith.constant 0 : index
    %c0_22 = arith.constant 0 : index
    %24 = vector.load %arg9[%c0_21, %c0_22] : memref<2x1xf32, #tpu.memory_space<vmem>>, vector<2x1xf32>
    %25 = vector.broadcast %24 : vector<2x1xf32> to vector<2x16xf32>
    %26 = arith.addf %23, %25 : vector<2x16xf32>
    %c0_23 = arith.constant 0 : index
    %c0_24 = arith.constant 0 : index
    %27 = vector.load %arg10[%c0_23, %c0_24] : memref<2x16xf32, #tpu.memory_space<vmem>>, vector<2x16xf32>
    tpu.vector_store %arg10[%c0_23, %c0_24], %26 {strides = array<i32>} : memref<2x16xf32, #tpu.memory_space<vmem>>, vector<2x16xf32>,
    return
  }
  func.func @transform_0(%arg0: i32) -> (i32, i32) {
    %c0_i32 = arith.constant 0 : i32
    %c0_i32_0 = arith.constant 0 : i32
    return %arg0, %c0_i32 : i32, i32
  }
  func.func @transform_1(%arg0: i32) -> (i32, i32) {
    %c0_i32 = arith.constant 0 : i32
    %c0_i32_0 = arith.constant 0 : i32
    %c0_i32_1 = arith.constant 0 : i32
    return %c0_i32, %c0_i32_0 : i32, i32
  }
  func.func @transform_2(%arg0: i32) -> (i32, i32) {
    %c0_i32 = arith.constant 0 : i32
    %c0_i32_0 = arith.constant 0 : i32
    %c0_i32_1 = arith.constant 0 : i32
    return %c0_i32, %c0_i32_0 : i32, i32
  }
  func.func @transform_3(%arg0: i32) -> (i32, i32) {
    %c0_i32 = arith.constant 0 : i32
    %c0_i32_0 = arith.constant 0 : i32
    %c0_i32_1 = arith.constant 0 : i32
    return %c0_i32, %c0_i32_0 : i32, i32
  }
  func.func @transform_4(%arg0: i32) -> (i32, i32) {
    %c0_i32 = arith.constant 0 : i32
    %c0_i32_0 = arith.constant 0 : i32
    %c0_i32_1 = arith.constant 0 : i32
    return %c0_i32, %c0_i32_0 : i32, i32
  }
  func.func @transform_5(%arg0: i32) -> (i32, i32) {
    %c0_i32 = arith.constant 0 : i32
    %c0_i32_0 = arith.constant 0 : i32
    %c0_i32_1 = arith.constant 0 : i32
    return %c0_i32, %c0_i32_0 : i32, i32
  }
  func.func @transform_6(%arg0: i32) -> (i32, i32) {
    %c0_i32 = arith.constant 0 : i32
    %c0_i32_0 = arith.constant 0 : i32
    %c0_i32_1 = arith.constant 0 : i32
    return %c0_i32, %c0_i32_0 : i32, i32
  }
  func.func @transform_7(%arg0: i32) -> (i32, i32) {
    %c0_i32 = arith.constant 0 : i32
    %c0_i32_0 = arith.constant 0 : i32
    %c0_i32_1 = arith.constant 0 : i32
    return %c0_i32, %c0_i32_0 : i32, i32
  }
  func.func @transform_8(%arg0: i32) -> (i32, i32) {
    %c0_i32 = arith.constant 0 : i32
    %c0_i32_0 = arith.constant 0 : i32
    %c0_i32_1 = arith.constant 0 : i32
    return %c0_i32, %c0_i32_0 : i32, i32
  }
  func.func @transform_9(%arg0: i32) -> (i32, i32) {
    %c0_i32 = arith.constant 0 : i32
    %c0_i32_0 = arith.constant 0 : i32
    return %c0_i32, %arg0 : i32, i32
  }
}

</mosaic_0001>

<llo_original>
// kernel: mlp2_forward.1
$region0: #{mlp2_forward.1}
  #allocation0 [shape = 'u32[]', space=smem, size = 0x4, offset = 0x4, fixed_abs, tag = 'smem constant byte address 0x4 - core index']
  #allocation1 [shape = 'u32[144,128]{1,0:T(1,128)}', space=vmem, size = 0x12000, scoped, tag = 'internal scratch']
  %s0 = inlined_call_operand.vmem [shape: f32[16,9], index: 0, kind: input, shape index: {}]
  %s1 = inlined_call_operand.vmem [shape: f32[20,9], index: 1, kind: input, shape index: {}]
  %s2 = inlined_call_operand.vmem [shape: f32[20,1], index: 2, kind: input, shape index: {}]
  %s3 = inlined_call_operand.vmem [shape: f32[30,20], index: 3, kind: input, shape index: {}]
  %s4 = inlined_call_operand.vmem [shape: f32[30,1], index: 4, kind: input, shape index: {}]
  %s5 = inlined_call_operand.vmem [shape: f32[10,30], index: 5, kind: input, shape index: {}]
  %s6 = inlined_call_operand.vmem [shape: f32[10,1], index: 6, kind: input, shape index: {}]
  %s7 = inlined_call_operand.vmem [shape: f32[2,10], index: 7, kind: input, shape index: {}]
  %s8 = inlined_call_operand.vmem [shape: f32[2,1], index: 8, kind: input, shape index: {}]
  %s9 = inlined_call_operand.hbm [shape: f32[2,16], index: 9, kind: output, shape index: {}]
  %s10 = sld [smem:[#allocation0]]
  $region46: #{mlp2_forward.1} parent=0
    _
  %s12 = ssub.s32 1, %s10
  %s13 = scalar_select 0, %s12, %s10
  $region1: #{mlp2_forward.1} parent=0
    #allocation2 [shape = 'u8[1024]{0}', space=vmem, size = 0x400, scoped, tag = 'output window, operand 0, single buffered']
    #allocation3 [shape = 's32[1]{0}', space=sflag, size = 0x4, scoped, tag = 'scoped memory for mlp2_forward.1']
    %14 = vsyncpa [#allocation3], 0
    // Predicated region
    $region2: #{mlp2_forward.1} parent=1 // pred_check
      _
    $region3: #{mlp2_forward.1} parent=1 // pred_check_branch
      %16 = sbr.rel (0) target = $region5
    $region4: #{mlp2_forward.1} parent=1 // pred_region
      _
    $region5: #{mlp2_forward.1} parent=1 // pred_fallthru
      _
    // Predicated region
    $region6: #{mlp2_forward.1} parent=1 // pred_check
      _
    $region7: #{mlp2_forward.1} parent=1 // pred_check_branch
      %18 = sbr.rel (0) target = $region9
    $region8: #{mlp2_forward.1} parent=1 // pred_region
      _
    $region9: #{mlp2_forward.1} parent=1 // pred_fallthru
      _
    // Predicated region
    $region10: #{mlp2_forward.1} parent=1 // pred_check
      _
    $region11: #{mlp2_forward.1} parent=1 // pred_check_branch
      %20 = sbr.rel (0) target = $region13
    $region12: #{mlp2_forward.1} parent=1 // pred_region
      _
    $region13: #{mlp2_forward.1} parent=1 // pred_fallthru
      _
    // Predicated region
    $region14: #{mlp2_forward.1} parent=1 // pred_check
      _
    $region15: #{mlp2_forward.1} parent=1 // pred_check_branch
      %22 = sbr.rel (0) target = $region17
    $region16: #{mlp2_forward.1} parent=1 // pred_region
      _
    $region17: #{mlp2_forward.1} parent=1 // pred_fallthru
      _
    // Predicated region
    $region18: #{mlp2_forward.1} parent=1 // pred_check
      _
    $region19: #{mlp2_forward.1} parent=1 // pred_check_branch
      %24 = sbr.rel (0) target = $region21
    $region20: #{mlp2_forward.1} parent=1 // pred_region
      _
    $region21: #{mlp2_forward.1} parent=1 // pred_fallthru
      _
    // Predicated region
    $region22: #{mlp2_forward.1} parent=1 // pred_check
      _
    $region23: #{mlp2_forward.1} parent=1 // pred_check_branch
      %26 = sbr.rel (0) target = $region25
    $region24: #{mlp2_forward.1} parent=1 // pred_region
      _
    $region25: #{mlp2_forward.1} parent=1 // pred_fallthru
      _
    // Predicated region
    $region26: #{mlp2_forward.1} parent=1 // pred_check
      _
    $region27: #{mlp2_forward.1} parent=1 // pred_check_branch
      %28 = sbr.rel (0) target = $region29
    $region28: #{mlp2_forward.1} parent=1 // pred_region
      _
    $region29: #{mlp2_forward.1} parent=1 // pred_fallthru
      _
    // Predicated region
    $region30: #{mlp2_forward.1} parent=1 // pred_check
      _
    $region31: #{mlp2_forward.1} parent=1 // pred_check_branch
      %30 = sbr.rel (0) target = $region33
    $region32: #{mlp2_forward.1} parent=1 // pred_region
      _
    $region33: #{mlp2_forward.1} parent=1 // pred_fallthru
      _
    // Predicated region
    $region34: #{mlp2_forward.1} parent=1 // pred_check
      _
    $region35: #{mlp2_forward.1} parent=1 // pred_check_branch
      %32 = sbr.rel (0) target = $region37
    $region36: #{mlp2_forward.1} parent=1 // pred_region
      _
    $region37: #{mlp2_forward.1} parent=1 // pred_fallthru
      _
    %v33 = vld [vmem:[%s0] sm:$0xff]
    %v34 = vld [vmem:[%s0 + $0x8] sm:$0xff]
    %v35 = vld [vmem:[%s1] sm:$0xff]
    %v36 = vld [vmem:[%s1 + $0x8] sm:$0xff]
    %v37 = vld [vmem:[%s1 + $0x10] sm:$0xf]
    %v38 = vld [vmem:[%s2] sm:$0xff]
    %v39 = vld [vmem:[%s2 + $0x8] sm:$0xff]
    %v40 = vld [vmem:[%s2 + $0x10] sm:$0xf]
    %42 = vset.pattern.permute.xlu0 0
    %43 = vperm.xlu0 %42, %v38
    %v44 = vpop.permute.xlu0 %43
    %47 = vset.pattern.permute.xlu0 0
    %48 = vperm.xlu0 %47, %v39
    %v49 = vpop.permute.xlu0 %48
    %52 = vset.pattern.permute.xlu0 0
    %53 = vperm.xlu0 %52, %v40
    %v54 = vpop.permute.xlu0 %53
    %vm56 = vcmask 72704
    %v58 = vsel %vm56, %v35, 0
    %v61 = vsel %vm56, %v36, 0
    %v64 = vsel %vm56, %v37, 0
    %v67 = vsel %vm56, %v33, 0
    %v70 = vsel %vm56, %v34, 0
    %72 = vmatprep.subr.mxu0 0.0
    %73 = vmatpush1.xpose.msra.mxu0 %v67
    %74 = vmatprep.subr.mxu0 0.0
    %75 = vmatpush1.xpose.msra.mxu0 %v70
    %76 = vmatprep.subr.mxu0 0.0
    %77 = vmatpush1.xpose.msra.mxu0 0.0
    %78 = vmatprep.subr.mxu0 0.0
    %79 = vmatpush1.xpose.msra.mxu0 0.0
    %80 = vmatprep.subr.mxu0 0.0
    %81 = vmatpush1.xpose.msra.mxu0 0.0
    %82 = vmatprep.subr.mxu0 0.0
    %83 = vmatpush1.xpose.msra.mxu0 0.0
    %84 = vmatprep.subr.mxu0 0.0
    %85 = vmatpush1.xpose.msra.mxu0 0.0
    %86 = vmatprep.subr.mxu0 0.0
    %87 = vmatpush1.xpose.msra.mxu0 0.0
    %88 = vmatprep.subr.mxu0 0.0
    %89 = vmatpush1.xpose.msra.mxu0 0.0
    %90 = vmatprep.subr.mxu0 0.0
    %91 = vmatpush1.xpose.msra.mxu0 0.0
    %92 = vmatprep.subr.mxu0 0.0
    %93 = vmatpush1.xpose.msra.mxu0 0.0
    %94 = vmatprep.subr.mxu0 0.0
    %95 = vmatpush1.xpose.msra.mxu0 0.0
    %96 = vmatprep.subr.mxu0 0.0
    %97 = vmatpush1.xpose.msra.mxu0 0.0
    %98 = vmatprep.subr.mxu0 0.0
    %99 = vmatpush1.xpose.msra.mxu0 0.0
    %100 = vmatprep.subr.mxu0 0.0
    %101 = vmatpush1.xpose.msra.mxu0 0.0
    %102 = vmatprep.subr.mxu0 0.0
    %103 = vmatpush1.xpose.msra.mxu0 0.0
    %104 = vmatprep.subr.mxu0 0.0
    %105 = vmatpush1.xpose.msra.mxu0 0.0
    %106 = vmatprep.subr.mxu0 0.0
    %107 = vmatpush1.xpose.msra.mxu0 0.0
    %108 = vmatprep.subr.mxu0 0.0
    %109 = vmatpush1.xpose.msra.mxu0 0.0
    %110 = vmatprep.subr.mxu0 0.0
    %111 = vmatpush1.xpose.msra.mxu0 0.0
    %112 = vmatprep.subr.mxu0 0.0
    %113 = vmatpush1.xpose.msra.mxu0 0.0
    %114 = vmatprep.subr.mxu0 0.0
    %115 = vmatpush1.xpose.msra.mxu0 0.0
    %116 = vmatprep.subr.mxu0 0.0
    %117 = vmatpush1.xpose.msra.mxu0 0.0
    %118 = vmatprep.subr.mxu0 0.0
    %119 = vmatpush1.xpose.msra.mxu0 0.0
    %120 = vmatprep.subr.mxu0 0.0
    %121 = vmatpush1.xpose.msra.mxu0 0.0
    %122 = vmatprep.subr.mxu0 0.0
    %123 = vmatpush1.xpose.msra.mxu0 0.0
    %124 = vmatprep.subr.mxu0 0.0
    %125 = vmatpush1.xpose.msra.mxu0 0.0
    %126 = vmatprep.subr.mxu0 0.0
    %127 = vmatpush1.xpose.msra.mxu0 0.0
    %128 = vmatprep.subr.mxu0 0.0
    %129 = vmatpush1.xpose.msra.mxu0 0.0
    %130 = vmatprep.subr.mxu0 0.0
    %131 = vmatpush1.xpose.msra.mxu0 0.0
    %132 = vmatprep.subr.mxu0 0.0
    %133 = vmatpush1.xpose.msra.mxu0 0.0
    %134 = vmatprep.subr.mxu0 0.0
    %135 = vmatpush1.xpose.msra.mxu0 0.0
    %136 = vmatprep.mubr.f32.mxu0 0.0
    %137 = vmatmul.mubr.f32.gmra.mrb[0].mxu0 %v58
    %v138 = vpop.f32.mrb[0].mxu0
    %v139 = vadd.f32 %v44, %v138
    %v140 = vpop.f32.mrb[0].mxu0
    %141 = vmatprep.mubr.f32.mxu0 0.0
    %142 = vmatmul.mubr.f32.gmra.mrb[0].mxu0 %v61
    %v143 = vpop.f32.mrb[0].mxu0
    %v144 = vadd.f32 %v49, %v143
    %v145 = vpop.f32.mrb[0].mxu0
    %146 = vmatprep.mubr.f32.mxu0 0.0
    %147 = vmatmul.mubr.f32.gmra.mrb[0].mxu0 %v64
    %v148 = vpop.f32.mrb[0].mxu0
    %v149 = vadd.f32 %v54, %v148
    %v150 = vpop.f32.mrb[0].mxu0
    %151 = vdwg.mxu0
    %v152 = vmax.f32 %v139, 0.0
    %v153 = vmax.f32 %v144, 0.0
    %v154 = vmax.f32 %v149, 0.0
    %v155 = vld [vmem:[%s3] sm:$0xff]
    %v156 = vld [vmem:[%s3 + $0x8] sm:$0xff]
    %v157 = vld [vmem:[%s3 + $0x10] sm:$0xff]
    %v158 = vld [vmem:[%s3 + $0x18] sm:$0x3f]
    %v159 = vld [vmem:[%s4] sm:$0xff]
    %v160 = vld [vmem:[%s4 + $0x8] sm:$0xff]
    %v161 = vld [vmem:[%s4 + $0x10] sm:$0xff]
    %v162 = vld [vmem:[%s4 + $0x18] sm:$0x3f]
    %164 = vset.pattern.permute.xlu0 0
    %165 = vperm.xlu0 %164, %v159
    %v166 = vpop.permute.xlu0 %165
    %169 = vset.pattern.permute.xlu0 0
    %170 = vperm.xlu0 %169, %v160
    %v171 = vpop.permute.xlu0 %170
    %174 = vset.pattern.permute.xlu0 0
    %175 = vperm.xlu0 %174, %v161
    %v176 = vpop.permute.xlu0 %175
    %179 = vset.pattern.permute.xlu0 0
    %180 = vperm.xlu0 %179, %v162
    %v181 = vpop.permute.xlu0 %180
    %vm183 = vcmask 162816
    %v185 = vsel %vm183, %v155, 0
    %v188 = vsel %vm183, %v156, 0
    %v191 = vsel %vm183, %v157, 0
    %v194 = vsel %vm183, %v158, 0
    %vm196 = vcmask 1043456
    %v198 = vsel %vm196, %v154, 0
    %200 = vmatprep.subr.mxu0 0.0
    %201 = vmatpush1.msra.mxu0 %v152
    %202 = vmatprep.subr.mxu0 0.0
    %203 = vmatpush1.msra.mxu0 %v153
    %204 = vmatprep.subr.mxu0 0.0
    %205 = vmatpush1.msra.mxu0 %v198
    %206 = vmatprep.subr.mxu0 0.0
    %207 = vmatpush1.msra.mxu0 0.0
    %208 = vmatprep.subr.mxu0 0.0
    %209 = vmatpush1.msra.mxu0 0.0
    %210 = vmatprep.subr.mxu0 0.0
    %211 = vmatpush1.msra.mxu0 0.0
    %212 = vmatprep.subr.mxu0 0.0
    %213 = vmatpush1.msra.mxu0 0.0
    %214 = vmatprep.subr.mxu0 0.0
    %215 = vmatpush1.msra.mxu0 0.0
    %216 = vmatprep.subr.mxu0 0.0
    %217 = vmatpush1.msra.mxu0 0.0
    %218 = vmatprep.subr.mxu0 0.0
    %219 = vmatpush1.msra.mxu0 0.0
    %220 = vmatprep.subr.mxu0 0.0
    %221 = vmatpush1.msra.mxu0 0.0
    %222 = vmatprep.subr.mxu0 0.0
    %223 = vmatpush1.msra.mxu0 0.0
    %224 = vmatprep.subr.mxu0 0.0
    %225 = vmatpush1.msra.mxu0 0.0
    %226 = vmatprep.subr.mxu0 0.0
    %227 = vmatpush1.msra.mxu0 0.0
    %228 = vmatprep.subr.mxu0 0.0
    %229 = vmatpush1.msra.mxu0 0.0
    %230 = vmatprep.subr.mxu0 0.0
    %231 = vmatpush1.msra.mxu0 0.0
    %232 = vmatprep.subr.mxu0 0.0
    %233 = vmatpush1.msra.mxu0 0.0
    %234 = vmatprep.subr.mxu0 0.0
    %235 = vmatpush1.msra.mxu0 0.0
    %236 = vmatprep.subr.mxu0 0.0
    %237 = vmatpush1.msra.mxu0 0.0
    %238 = vmatprep.subr.mxu0 0.0
    %239 = vmatpush1.msra.mxu0 0.0
    %240 = vmatprep.subr.mxu0 0.0
    %241 = vmatpush1.msra.mxu0 0.0
    %242 = vmatprep.subr.mxu0 0.0
    %243 = vmatpush1.msra.mxu0 0.0
    %244 = vmatprep.subr.mxu0 0.0
    %245 = vmatpush1.msra.mxu0 0.0
    %246 = vmatprep.subr.mxu0 0.0
    %247 = vmatpush1.msra.mxu0 0.0
    %248 = vmatprep.subr.mxu0 0.0
    %249 = vmatpush1.msra.mxu0 0.0
    %250 = vmatprep.subr.mxu0 0.0
    %251 = vmatpush1.msra.mxu0 0.0
    %252 = vmatprep.subr.mxu0 0.0
    %253 = vmatpush1.msra.mxu0 0.0
    %254 = vmatprep.subr.mxu0 0.0
    %255 = vmatpush1.msra.mxu0 0.0
    %256 = vmatprep.subr.mxu0 0.0
    %257 = vmatpush1.msra.mxu0 0.0
    %258 = vmatprep.subr.mxu0 0.0
    %259 = vmatpush1.msra.mxu0 0.0
    %260 = vmatprep.subr.mxu0 0.0
    %261 = vmatpush1.msra.mxu0 0.0
    %262 = vmatprep.subr.mxu0 0.0
    %263 = vmatpush1.msra.mxu0 0.0
    %264 = vmatprep.mubr.f32.mxu0 0.0
    %265 = vmatmul.mubr.f32.gmra.mrb[0].mxu0 %v185
    %v266 = vpop.f32.mrb[0].mxu0
    %v267 = vadd.f32 %v166, %v266
    %v268 = vpop.f32.mrb[0].mxu0
    %269 = vmatprep.mubr.f32.mxu0 0.0
    %270 = vmatmul.mubr.f32.gmra.mrb[0].mxu0 %v188
    %v271 = vpop.f32.mrb[0].mxu0
    %v272 = vadd.f32 %v171, %v271
    %v273 = vpop.f32.mrb[0].mxu0
    %274 = vmatprep.mubr.f32.mxu0 0.0
    %275 = vmatmul.mubr.f32.gmra.mrb[0].mxu0 %v191
    %v276 = vpop.f32.mrb[0].mxu0
    %v277 = vadd.f32 %v176, %v276
    %v278 = vpop.f32.mrb[0].mxu0
    %279 = vmatprep.mubr.f32.mxu0 0.0
    %280 = vmatmul.mubr.f32.gmra.mrb[0].mxu0 %v194
    %v281 = vpop.f32.mrb[0].mxu0
    %v282 = vadd.f32 %v181, %v281
    %v283 = vpop.f32.mrb[0].mxu0
    %284 = vdwg.mxu0
    %v285 = vmax.f32 %v267, 0.0
    %v286 = vmax.f32 %v272, 0.0
    %v287 = vmax.f32 %v277, 0.0
    %v288 = vmax.f32 %v282, 0.0
    %v289 = vld [vmem:[%s5] sm:$0xff]
    %v290 = vld [vmem:[%s5 + $0x8] sm:$0x3]
    %v291 = vld [vmem:[%s6] sm:$0xff]
    %v292 = vld [vmem:[%s6 + $0x8] sm:$0x3]
    %294 = vset.pattern.permute.xlu0 0
    %295 = vperm.xlu0 %294, %v291
    %v296 = vpop.permute.xlu0 %295
    %299 = vset.pattern.permute.xlu0 0
    %300 = vperm.xlu0 %299, %v292
    %v301 = vpop.permute.xlu0 %300
    %vm303 = vcmask 244736
    %v305 = vsel %vm303, %v289, 0
    %v308 = vsel %vm303, %v290, 0
    %vm310 = vcmask 1045504
    %v312 = vsel %vm310, %v288, 0
    %314 = vmatprep.subr.mxu0 0.0
    %315 = vmatpush1.msra.mxu0 %v285
    %316 = vmatprep.subr.mxu0 0.0
    %317 = vmatpush1.msra.mxu0 %v286
    %318 = vmatprep.subr.mxu0 0.0
    %319 = vmatpush1.msra.mxu0 %v287
    %320 = vmatprep.subr.mxu0 0.0
    %321 = vmatpush1.msra.mxu0 %v312
    %322 = vmatprep.subr.mxu0 0.0
    %323 = vmatpush1.msra.mxu0 0.0
    %324 = vmatprep.subr.mxu0 0.0
    %325 = vmatpush1.msra.mxu0 0.0
    %326 = vmatprep.subr.mxu0 0.0
    %327 = vmatpush1.msra.mxu0 0.0
    %328 = vmatprep.subr.mxu0 0.0
    %329 = vmatpush1.msra.mxu0 0.0
    %330 = vmatprep.subr.mxu0 0.0
    %331 = vmatpush1.msra.mxu0 0.0
    %332 = vmatprep.subr.mxu0 0.0
    %333 = vmatpush1.msra.mxu0 0.0
    %334 = vmatprep.subr.mxu0 0.0
    %335 = vmatpush1.msra.mxu0 0.0
    %336 = vmatprep.subr.mxu0 0.0
    %337 = vmatpush1.msra.mxu0 0.0
    %338 = vmatprep.subr.mxu0 0.0
    %339 = vmatpush1.msra.mxu0 0.0
    %340 = vmatprep.subr.mxu0 0.0
    %341 = vmatpush1.msra.mxu0 0.0
    %342 = vmatprep.subr.mxu0 0.0
    %343 = vmatpush1.msra.mxu0 0.0
    %344 = vmatprep.subr.mxu0 0.0
    %345 = vmatpush1.msra.mxu0 0.0
    %346 = vmatprep.subr.mxu0 0.0
    %347 = vmatpush1.msra.mxu0 0.0
    %348 = vmatprep.subr.mxu0 0.0
    %349 = vmatpush1.msra.mxu0 0.0
    %350 = vmatprep.subr.mxu0 0.0
    %351 = vmatpush1.msra.mxu0 0.0
    %352 = vmatprep.subr.mxu0 0.0
    %353 = vmatpush1.msra.mxu0 0.0
    %354 = vmatprep.subr.mxu0 0.0
    %355 = vmatpush1.msra.mxu0 0.0
    %356 = vmatprep.subr.mxu0 0.0
    %357 = vmatpush1.msra.mxu0 0.0
    %358 = vmatprep.subr.mxu0 0.0
    %359 = vmatpush1.msra.mxu0 0.0
    %360 = vmatprep.subr.mxu0 0.0
    %361 = vmatpush1.msra.mxu0 0.0
    %362 = vmatprep.subr.mxu0 0.0
    %363 = vmatpush1.msra.mxu0 0.0
    %364 = vmatprep.subr.mxu0 0.0
    %365 = vmatpush1.msra.mxu0 0.0
    %366 = vmatprep.subr.mxu0 0.0
    %367 = vmatpush1.msra.mxu0 0.0
    %368 = vmatprep.subr.mxu0 0.0
    %369 = vmatpush1.msra.mxu0 0.0
    %370 = vmatprep.subr.mxu0 0.0
    %371 = vmatpush1.msra.mxu0 0.0
    %372 = vmatprep.subr.mxu0 0.0
    %373 = vmatpush1.msra.mxu0 0.0
    %374 = vmatprep.subr.mxu0 0.0
    %375 = vmatpush1.msra.mxu0 0.0
    %376 = vmatprep.subr.mxu0 0.0
    %377 = vmatpush1.msra.mxu0 0.0
    %378 = vmatprep.mubr.f32.mxu0 0.0
    %379 = vmatmul.mubr.f32.gmra.mrb[0].mxu0 %v305
    %v380 = vpop.f32.mrb[0].mxu0
    %v381 = vadd.f32 %v296, %v380
    %v382 = vpop.f32.mrb[0].mxu0
    %383 = vmatprep.mubr.f32.mxu0 0.0
    %384 = vmatmul.mubr.f32.gmra.mrb[0].mxu0 %v308
    %v385 = vpop.f32.mrb[0].mxu0
    %v386 = vadd.f32 %v301, %v385
    %v387 = vpop.f32.mrb[0].mxu0
    %388 = vdwg.mxu0
    %v389 = vmax.f32 %v381, 0.0
    %v390 = vmax.f32 %v386, 0.0
    %v391 = vld [vmem:[%s7] sm:$0x3]
    %v392 = vld [vmem:[%s8] sm:$0x3]
    %394 = vset.pattern.permute.xlu0 0
    %395 = vperm.xlu0 %394, %v392
    %v396 = vpop.permute.xlu0 %395
    %vm398 = vcmask 80896
    %v400 = vsel %vm398, %v391, 0
    %vm402 = vcmask 1041408
    %v404 = vsel %vm402, %v390, 0
    %406 = vmatprep.subr.mxu0 0.0
    %407 = vmatpush1.msra.mxu0 %v389
    %408 = vmatprep.subr.mxu0 0.0
    %409 = vmatpush1.msra.mxu0 %v404
    %410 = vmatprep.subr.mxu0 0.0
    %411 = vmatpush1.msra.mxu0 0.0
    %412 = vmatprep.subr.mxu0 0.0
    %413 = vmatpush1.msra.mxu0 0.0
    %414 = vmatprep.subr.mxu0 0.0
    %415 = vmatpush1.msra.mxu0 0.0
    %416 = vmatprep.subr.mxu0 0.0
    %417 = vmatpush1.msra.mxu0 0.0
    %418 = vmatprep.subr.mxu0 0.0
    %419 = vmatpush1.msra.mxu0 0.0
    %420 = vmatprep.subr.mxu0 0.0
    %421 = vmatpush1.msra.mxu0 0.0
    %422 = vmatprep.subr.mxu0 0.0
    %423 = vmatpush1.msra.mxu0 0.0
    %424 = vmatprep.subr.mxu0 0.0
    %425 = vmatpush1.msra.mxu0 0.0
    %426 = vmatprep.subr.mxu0 0.0
    %427 = vmatpush1.msra.mxu0 0.0
    %428 = vmatprep.subr.mxu0 0.0
    %429 = vmatpush1.msra.mxu0 0.0
    %430 = vmatprep.subr.mxu0 0.0
    %431 = vmatpush1.msra.mxu0 0.0
    %432 = vmatprep.subr.mxu0 0.0
    %433 = vmatpush1.msra.mxu0 0.0
    %434 = vmatprep.subr.mxu0 0.0
    %435 = vmatpush1.msra.mxu0 0.0
    %436 = vmatprep.subr.mxu0 0.0
    %437 = vmatpush1.msra.mxu0 0.0
    %438 = vmatprep.subr.mxu0 0.0
    %439 = vmatpush1.msra.mxu0 0.0
    %440 = vmatprep.subr.mxu0 0.0
    %441 = vmatpush1.msra.mxu0 0.0
    %442 = vmatprep.subr.mxu0 0.0
    %443 = vmatpush1.msra.mxu0 0.0
    %444 = vmatprep.subr.mxu0 0.0
    %445 = vmatpush1.msra.mxu0 0.0
    %446 = vmatprep.subr.mxu0 0.0
    %447 = vmatpush1.msra.mxu0 0.0
    %448 = vmatprep.subr.mxu0 0.0
    %449 = vmatpush1.msra.mxu0 0.0
    %450 = vmatprep.subr.mxu0 0.0
    %451 = vmatpush1.msra.mxu0 0.0
    %452 = vmatprep.subr.mxu0 0.0
    %453 = vmatpush1.msra.mxu0 0.0
    %454 = vmatprep.subr.mxu0 0.0
    %455 = vmatpush1.msra.mxu0 0.0
    %456 = vmatprep.subr.mxu0 0.0
    %457 = vmatpush1.msra.mxu0 0.0
    %458 = vmatprep.subr.mxu0 0.0
    %459 = vmatpush1.msra.mxu0 0.0
    %460 = vmatprep.subr.mxu0 0.0
    %461 = vmatpush1.msra.mxu0 0.0
    %462 = vmatprep.subr.mxu0 0.0
    %463 = vmatpush1.msra.mxu0 0.0
    %464 = vmatprep.subr.mxu0 0.0
    %465 = vmatpush1.msra.mxu0 0.0
    %466 = vmatprep.subr.mxu0 0.0
    %467 = vmatpush1.msra.mxu0 0.0
    %468 = vmatprep.subr.mxu0 0.0
    %469 = vmatpush1.msra.mxu0 0.0
    %470 = vmatprep.mubr.f32.mxu0 0.0
    %471 = vmatmul.mubr.f32.gmra.mrb[0].mxu0 %v400
    %v472 = vpop.f32.mrb[0].mxu0
    %v473 = vadd.f32 %v396, %v472
    %v474 = vpop.f32.mrb[0].mxu0
    %475 = vdwg.mxu0
    %vm476 = vcmask 123904
    %477 = vst.msk [vmem:[#allocation2] sm:$0x3] %vm476, %v473
    // Predicated region
    $region38: #{mlp2_forward.1} parent=1 // pred_check
      _
    $region39: #{mlp2_forward.1} parent=1 // pred_check_branch
      %479 = sbr.rel (0) target = $region41
    $region40: #{mlp2_forward.1} parent=1 // pred_region
      %s481 = ssub.s32 32, 32
      %482 = vsyncadd [#allocation3], %s481
      %s484 = sshll.u32 [#allocation2], 4
      %s485 = int_to_ptr.vmem [resolvable:$true] %s484
      %487 = dma.vmem_to_hbm [thread:$0]  %s485, 32, %s9, [#allocation3]
    $region41: #{mlp2_forward.1} parent=1 // pred_fallthru
      _
    // Predicated region
    $region42: #{mlp2_forward.1} parent=1 // pred_check
      _
    $region43: #{mlp2_forward.1} parent=1 // pred_check_branch
      %489 = sbr.rel (0) target = $region45
    $region44: #{mlp2_forward.1} parent=1 // pred_region
      %490 = dma.done [#allocation3], 32
    $region45: #{mlp2_forward.1} parent=1 // pred_fallthru
      _
    %491 = vsyncpa [#allocation3], 1

</llo_original>
